<compile_context>
chip_gen: v7x
topology: tpu7x:2x2x1
jax: 0.10.0
libtpu: 0.0.40
codegen_flags: <defaults>
</compile_context>

<pallas_src>
import math

import jax
import jax.numpy as jnp
from jax.experimental import pallas as pl
from jax.experimental.pallas import tpu as pltpu


def _dyt_kernel(alpha_ref, w_ref, x_ref, o_ref):
    # alpha_ref: SMEM (1,) f32; w_ref: (1, tn) f32; x_ref/o_ref: (tm, tn)
    a = alpha_ref[0]
    xf = x_ref[...].astype(jnp.float32)
    o_ref[...] = (w_ref[...] * jnp.tanh(a * xf)).astype(o_ref.dtype)


def _pick_tn(W, bytes_per_elem, row_pack, budget_bytes):
    """Largest lane-dense column tile (multiple of 128 dividing W) under budget."""
    if W % 128 != 0:
        return W                       # full extent: block dim == array dim
    tn_max = max(128, budget_bytes // (row_pack * bytes_per_elem))
    if W <= tn_max:
        return W
    q = W // 128
    best = 1
    for d in range(1, tn_max // 128 + 1):
        if q % d == 0:
            best = d
    return 128 * best


def dynamic_tanh(x, alpha, weight, *,
                 tile_budget_bytes=4 * 1024 * 1024,
                 donate_input=False):
    """x: (..., H) array, alpha: (1,) f32, weight: (H,) f32."""
    if x.size == 0:
        return x

    orig_shape = x.shape
    H = orig_shape[-1]
    dtype = x.dtype
    bytes_per = jnp.dtype(dtype).itemsize
    # sublane packing: f32 -> 8, bf16 -> 16, int8/fp8 -> 32 rows per vreg tile
    row_pack = max(8, 32 // bytes_per)

    num_rows = int(x.size) // H

    # Lane-dense fold (only when it divides the row count -> zero-copy reshape).
    k = 128 // math.gcd(H, 128)
    if k > 1 and num_rows % k == 0:
        W = k * H
        R = num_rows // k
    else:
        k = 1
        W = H
        R = num_rows

    x2 = x.reshape(R, W)
    w_row = weight.astype(jnp.float32).reshape(-1)
    if k > 1:
        w_row = jnp.tile(w_row, k)
    w2 = w_row.reshape(1, W)
    a = alpha.astype(jnp.float32).reshape(1)

    # Column tile: lane-dense, under budget.
    tn = _pick_tn(W, bytes_per, row_pack, tile_budget_bytes)

    # Row tile under budget; ragged R handled by cdiv grid + masked last block.
    tm_cap = max(row_pack,
                 (tile_budget_bytes // (tn * bytes_per)) // row_pack * row_pack)
    tm = R if R <= tm_cap else tm_cap

    grid_cols = pl.cdiv(W, tn)
    grid_rows = pl.cdiv(R, tm)

    # Keep at least 2 parallel grid steps when the input is big enough
    # (v7x has 2 TensorCores sharing HBM; a (1,1) grid leaves one idle).
    if grid_cols * grid_rows == 1 and R >= 2 * row_pack:
        tm = -(-((R + 1) // 2) // row_pack) * row_pack
        grid_rows = pl.cdiv(R, tm)

    # VMEM limit from the actual footprint: 2 buffers x (x tile + out tile +
    # weight tile) + headroom, capped for v7x's 64 MiB per-TC VMEM.
    tile_bytes = tm * tn * bytes_per
    w_tile_bytes = tn * 4
    footprint = 2 * (2 * tile_bytes + w_tile_bytes)
    vmem_limit = int(min(max(footprint + (2 << 20), 8 << 20), 64 << 20))

    out2 = pl.pallas_call(
        _dyt_kernel,
        out_shape=jax.ShapeDtypeStruct((R, W), dtype),
        grid_spec=pltpu.PrefetchScalarGridSpec(
            num_scalar_prefetch=0,
            # Column axis outermost: weight block index is constant across the
            # inner row sweep, so its DMA is skipped between steps.
            grid=(grid_cols, grid_rows),
            in_specs=[
                pl.BlockSpec(memory_space=pltpu.SMEM),            # alpha
                pl.BlockSpec((1, tn), lambda j, i: (0, j)),       # weight
                pl.BlockSpec((tm, tn), lambda j, i: (i, j)),      # x
            ],
            out_specs=pl.BlockSpec((tm, tn), lambda j, i: (i, j)),
        ),
        compiler_params=pltpu.CompilerParams(
            dimension_semantics=("parallel", "parallel"),
            vmem_limit_bytes=vmem_limit,
        ),
        input_output_aliases=({2: 0} if donate_input else {}),
    )(a, w2, x2)

    return out2.reshape(orig_shape)


if __name__ == "__main__":
    # Deterministic parameter init (matches nn.Module __init__):
    hidden = 32
    alpha = jnp.ones((1,), jnp.float32) * 0.5
    weight = jnp.ones((hidden,), jnp.float32)

    key = jax.random.PRNGKey(0)

    # Check 1: (batch=2, seq=8, hidden=32) -- folded lane-dense path.
    x = jax.random.normal(key, (2, 8, hidden), dtype=jnp.float32)
    out = jax.block_until_ready(dynamic_tanh(x, alpha, weight))
    ref = weight * jnp.tanh(alpha * x)
    assert out.shape == x.shape and out.dtype == x.dtype
    assert jnp.allclose(out, ref, atol=1e-5, rtol=1e-5)

    # Check 2: ragged shape (no fold, masked partial last row block, 2-step grid).
    h2 = 40
    alpha2 = jnp.ones((1,), jnp.float32) * 0.5
    weight2 = jnp.ones((h2,), jnp.float32)
    x2 = jax.random.normal(jax.random.PRNGKey(1), (3, 7, h2), dtype=jnp.float32)
    out2 = jax.block_until_ready(dynamic_tanh(x2, alpha2, weight2))
    ref2 = weight2 * jnp.tanh(alpha2 * x2)
    assert out2.shape == x2.shape and out2.dtype == x2.dtype
    assert jnp.allclose(out2, ref2, atol=1e-5, rtol=1e-5)

    print("KERNEL_OK")
</pallas_src>

<mosaic_0001>
module attributes {stable_mosaic.version = 11 : i64} {
  func.func @_dyt_kernel(%arg0: i32, %arg1: i32, %arg2: memref<1xf32, #tpu.memory_space<smem>>, %arg3: memref<1x128xf32, #tpu.memory_space<vmem>>, %arg4: memref<4x128xf32, #tpu.memory_space<vmem>>, %arg5: memref<4x128xf32, #tpu.memory_space<vmem>>) attributes {dimension_semantics = [#tpu.dimension_semantics<parallel>, #tpu.dimension_semantics<parallel>], iteration_bounds = array<i64: 1, 1>, scalar_prefetch = 0 : i64, scratch_operands = 0 : i64, tpu.core_type = #tpu.core_type<tc>, window_params = [{transform_indices = @transform_0, window_bounds = array<i64: 1>}, {transform_indices = @transform_1, window_bounds = array<i64: 1, 128>}, {transform_indices = @transform_2, window_bounds = array<i64: 4, 128>}, {transform_indices = @transform_3, window_bounds = array<i64: 4, 128>}]} {
    %c0 = arith.constant 0 : index
    %0 = memref.load %arg2[%c0] : memref<1xf32, #tpu.memory_space<smem>>
    %c0_0 = arith.constant 0 : index
    %c0_1 = arith.constant 0 : index
    %1 = vector.load %arg4[%c0_0, %c0_1] : memref<4x128xf32, #tpu.memory_space<vmem>>, vector<4x128xf32>
    %c0_2 = arith.constant 0 : index
    %c0_3 = arith.constant 0 : index
    %2 = vector.load %arg3[%c0_2, %c0_3] : memref<1x128xf32, #tpu.memory_space<vmem>>, vector<1x128xf32>
    %3 = vector.broadcast %0 : f32 to vector<4x128xf32>
    %4 = arith.mulf %3, %1 : vector<4x128xf32>
    %5 = math.tanh %4 : vector<4x128xf32>
    %6 = vector.broadcast %2 : vector<1x128xf32> to vector<4x128xf32>
    %7 = arith.mulf %6, %5 : vector<4x128xf32>
    %c0_4 = arith.constant 0 : index
    %c0_5 = arith.constant 0 : index
    %8 = vector.load %arg5[%c0_4, %c0_5] : memref<4x128xf32, #tpu.memory_space<vmem>>, vector<4x128xf32>
    tpu.vector_store %arg5[%c0_4, %c0_5], %7 {strides = array<i32>} : memref<4x128xf32, #tpu.memory_space<vmem>>, vector<4x128xf32>,
    return
  }
  func.func @transform_0(%arg0: i32, %arg1: i32) -> i32 {
    %c0_i32 = arith.constant 0 : i32
    %c0_i32_0 = arith.constant 0 : i32
    return %c0_i32 : i32
  }
  func.func @transform_1(%arg0: i32, %arg1: i32) -> (i32, i32) {
    %c0_i32 = arith.constant 0 : i32
    %c0_i32_0 = arith.constant 0 : i32
    return %c0_i32, %arg0 : i32, i32
  }
  func.func @transform_2(%arg0: i32, %arg1: i32) -> (i32, i32) {
    %c0_i32 = arith.constant 0 : i32
    return %arg1, %arg0 : i32, i32
  }
  func.func @transform_3(%arg0: i32, %arg1: i32) -> (i32, i32) {
    %c0_i32 = arith.constant 0 : i32
    return %arg1, %arg0 : i32, i32
  }
}

</mosaic_0001>

<llo_original>
// kernel: tpu_custom_call.1
$region0: #{tpu_custom_call.1}
  #allocation0 [shape = 'u32[]', space=smem, size = 0x4, offset = 0x4, fixed_abs, tag = 'smem constant byte address 0x4 - core index']
  #allocation1 [shape = 'u32[144,128]{1,0:T(1,128)}', space=vmem, size = 0x12000, scoped, tag = 'internal scratch']
  #allocation2 [shape = 'f32[1]{0:T(128)S(6)}', space=smem, size = 0x200, scoped, tag = 'scoped memory for tpu_custom_call.1']
  %s0 = inlined_call_operand.<no memory space> [shape: f32[1], index: 0, kind: input, shape index: {}]
  %s1 = inlined_call_operand.vmem [shape: f32[1,128], index: 1, kind: input, shape index: {}]
  %s2 = inlined_call_operand.vmem [shape: f32[4,128], index: 2, kind: input, shape index: {}]
  %s3 = inlined_call_operand.hbm [shape: f32[4,128], index: 3, kind: output, shape index: {}]
  %s4 = sld [smem:[#allocation0]]
  $region22: #{tpu_custom_call.1} parent=0
    _
  %s6 = ssub.s32 1, %s4
  %s7 = scalar_select 0, %s6, %s4
  %8 = sst [smem:[#allocation2]] %s0
  $region1: #{tpu_custom_call.1} parent=0
    #allocation3 [shape = 'u8[2048]{0}', space=vmem, size = 0x800, scoped, tag = 'output window, operand 0, single buffered']
    #allocation4 [shape = 's32[1]{0}', space=sflag, size = 0x4, scoped, tag = 'scoped memory for tpu_custom_call.1']
    %9 = vsyncpa [#allocation4], 0
    // Predicated region
    $region2: #{tpu_custom_call.1} parent=1 // pred_check
      _
    $region3: #{tpu_custom_call.1} parent=1 // pred_check_branch
      %11 = sbr.rel (0) target = $region5
    $region4: #{tpu_custom_call.1} parent=1 // pred_region
      _
    $region5: #{tpu_custom_call.1} parent=1 // pred_fallthru
      _
    // Predicated region
    $region6: #{tpu_custom_call.1} parent=1 // pred_check
      _
    $region7: #{tpu_custom_call.1} parent=1 // pred_check_branch
      %13 = sbr.rel (0) target = $region9
    $region8: #{tpu_custom_call.1} parent=1 // pred_region
      _
    $region9: #{tpu_custom_call.1} parent=1 // pred_fallthru
      _
    // Predicated region
    $region10: #{tpu_custom_call.1} parent=1 // pred_check
      _
    $region11: #{tpu_custom_call.1} parent=1 // pred_check_branch
      %15 = sbr.rel (0) target = $region13
    $region12: #{tpu_custom_call.1} parent=1 // pred_region
      _
    $region13: #{tpu_custom_call.1} parent=1 // pred_fallthru
      _
    %s16 = sld [smem:[#allocation2]]
    %v17 = vld [vmem:[%s2] sm:$0xf]
    %v18 = vld [vmem:[%s1] sm:$0x1]
    %v19 = vstv %s16
    %v20 = vmul.f32 %v19, %v17
    %v21 = vtanh.pop %v20
    %v23 = vlaneseq
    %v24 = vshrl.u32 %v23, 7
    %v25 = vsub.s32 0, %v24
    %v26 = vrot.slane %v18, %v25
    %v28 = vmul.f32 %v26, %v21
    %29 = vst [vmem:[#allocation3] sm:$0xf] %v28
    // Predicated region
    $region14: #{tpu_custom_call.1} parent=1 // pred_check
      _
    $region15: #{tpu_custom_call.1} parent=1 // pred_check_branch
      %31 = sbr.rel (0) target = $region17
    $region16: #{tpu_custom_call.1} parent=1 // pred_region
      %s33 = ssub.s32 64, 64
      %34 = vsyncadd [#allocation4], %s33
      %s36 = sshll.u32 [#allocation3], 4
      %s37 = int_to_ptr.vmem [resolvable:$true] %s36
      %39 = dma.vmem_to_hbm [thread:$0]  %s37, 64, %s3, [#allocation4]
    $region17: #{tpu_custom_call.1} parent=1 // pred_fallthru
      _
    // Predicated region
    $region18: #{tpu_custom_call.1} parent=1 // pred_check
      _
    $region19: #{tpu_custom_call.1} parent=1 // pred_check_branch
      %41 = sbr.rel (0) target = $region21
    $region20: #{tpu_custom_call.1} parent=1 // pred_region
      %42 = dma.done [#allocation4], 64
    $region21: #{tpu_custom_call.1} parent=1 // pred_fallthru
      _
    %43 = vsyncpa [#allocation4], 1

</llo_original>
